<compile_context>
chip_gen: v7x
topology: tpu7x:2x2x1
jax: 0.10.0
libtpu: 0.0.40
codegen_flags: <defaults>
</compile_context>

<pallas_src>
import jax
import jax.numpy as jnp
from jax.experimental import pallas as pl
from jax.experimental.pallas import tpu as pltpu

D_IN = 64     # input feature dim
HID = 32      # encoder hidden (latent) dim
BATCH = 8     # small test batch


def encoder_kernel(x_ref, wt_ref, b_ref, o_ref):
    # x_ref : (tile_n, D)  bf16/f32     wt_ref : (D, H)  bf16/f32
    # b_ref : (1, H)       f32          o_ref  : (tile_n, H)
    # Natural [M,K]x[K,N] MXU matmul; f32 accumulate; bias broadcast over rows.
    y = jnp.dot(x_ref[...], wt_ref[...], preferred_element_type=jnp.float32)
    y = y + b_ref[...]                       # (tile_n, H) + (1, H)
    o_ref[...] = jnp.maximum(y, 0.0).astype(o_ref.dtype)


def _round_up(v, m):
    return ((v + m - 1) // m) * m


def encoder_ae_forward(x, w, b, *, tile_n=2048,
                       compute_dtype=jnp.bfloat16, out_dtype=jnp.float32):
    """relu(x @ w.T + b) via pallas_call.

    x: (N, D) float32, w: (H, D) float32 (PyTorch Linear layout), b: (H,).
    Returns (N, H) out_dtype.
    """
    n, d = x.shape
    h, d2 = w.shape
    assert d == d2 and b.shape == (h,)

    # Tile sizing: 8-row (sublane) aligned, as large as the batch allows but
    # never bigger than needed.  For batches >= 512 rows cap at ~half the
    # batch so the "parallel" grid has >=2 steps (keeps both v7x TCs busy).
    tile_n = max(8, (tile_n // 8) * 8)
    n8 = _round_up(n, 8)
    tile_n = min(tile_n, n8)
    if n8 >= 512 and tile_n > pl.cdiv(n8, 2):
        tile_n = _round_up(pl.cdiv(n8, 2), 8)
    grid = (pl.cdiv(n, tile_n),)   # ragged last block handled by Pallas

    x = x.astype(compute_dtype)
    w_t = jnp.transpose(w).astype(compute_dtype)   # (D, H): one-time 8 KiB
    b2d = b.reshape(1, h).astype(jnp.float32)      # resident f32 bias row

    return pl.pallas_call(
        encoder_kernel,
        out_shape=jax.ShapeDtypeStruct((n, h), out_dtype),
        grid_spec=pltpu.PrefetchScalarGridSpec(
            num_scalar_prefetch=0,
            grid=grid,
            in_specs=[
                pl.BlockSpec((tile_n, d), lambda i: (i, 0)),   # x batch tile
                pl.BlockSpec((d, h), lambda i: (0, 0)),        # W^T, resident
                pl.BlockSpec((1, h), lambda i: (0, 0)),        # bias, resident
            ],
            out_specs=pl.BlockSpec((tile_n, h), lambda i: (i, 0)),  # batch-major
        ),
        compiler_params=pltpu.CompilerParams(
            dimension_semantics=("parallel",)),   # shard batch tiles over TCs
    )(x, w_t, b2d)


def init_params(key, d_in, hid):
    """Deterministic init mimicking torch.nn.Linear defaults (U[-1/sqrt(fan_in), +])."""
    k_w, k_b = jax.random.split(key)
    bound = 1.0 / jnp.sqrt(jnp.float32(d_in))
    # PyTorch stores weight as (out, in); keep that layout.
    w = jax.random.uniform(k_w, (hid, d_in), jnp.float32, -bound, bound)
    b = jax.random.uniform(k_b, (hid,), jnp.float32, -bound, bound)
    return w, b


def reference_forward(x, w, b):
    return jnp.maximum(x @ w.T + b[None, :], 0.0)


if __name__ == "__main__":
    key = jax.random.PRNGKey(0)
    k_x, k_p, k_x2 = jax.random.split(key, 3)
    w, b = init_params(k_p, D_IN, HID)

    # ---- Small batch (module's nominal shape): N=8, D=64, H=32 -------------
    x = jax.random.normal(k_x, (BATCH, D_IN), jnp.float32)
    ref = reference_forward(x, w, b)

    # Full-precision path: tight check.
    out_f32 = jax.block_until_ready(
        encoder_ae_forward(x, w, b, compute_dtype=jnp.float32))
    assert out_f32.shape == (BATCH, HID)
    assert jnp.allclose(out_f32, ref, atol=1e-5, rtol=1e-5)

    # Default bf16-input path (halves input DMA, f32 accumulation): loose check.
    out_bf16 = jax.block_until_ready(encoder_ae_forward(x, w, b))
    assert out_bf16.shape == (BATCH, HID)
    assert jnp.allclose(out_bf16, ref, atol=5e-2, rtol=5e-2)

    # ---- Multi-tile + ragged batch (exercises grid>1 and partial last block)
    N2 = 777   # not a multiple of the tile -> ragged last block, 2-step grid
    x2 = jax.random.normal(k_x2, (N2, D_IN), jnp.float32)
    ref2 = reference_forward(x2, w, b)

    out2_f32 = jax.block_until_ready(
        encoder_ae_forward(x2, w, b, compute_dtype=jnp.float32))
    assert out2_f32.shape == (N2, HID)
    assert jnp.allclose(out2_f32, ref2, atol=1e-5, rtol=1e-5)

    out2_bf16 = jax.block_until_ready(encoder_ae_forward(x2, w, b))
    assert out2_bf16.shape == (N2, HID)
    assert jnp.allclose(out2_bf16, ref2, atol=5e-2, rtol=5e-2)

    print("KERNEL_OK")
</pallas_src>

<mosaic_0001>
module attributes {stable_mosaic.version = 11 : i64} {
  func.func @encoder_kernel(%arg0: i32, %arg1: memref<8x64xf32, #tpu.memory_space<vmem>>, %arg2: memref<64x32xf32, #tpu.memory_space<vmem>>, %arg3: memref<1x32xf32, #tpu.memory_space<vmem>>, %arg4: memref<8x32xf32, #tpu.memory_space<vmem>>) attributes {dimension_semantics = [#tpu.dimension_semantics<parallel>], iteration_bounds = array<i64: 1>, scalar_prefetch = 0 : i64, scratch_operands = 0 : i64, tpu.core_type = #tpu.core_type<tc>, window_params = [{transform_indices = @transform_0, window_bounds = array<i64: 8, 64>}, {pipeline_mode = #tpu.pipeline_mode<synchronous>, transform_indices = @transform_1, window_bounds = array<i64: 64, 32>}, {pipeline_mode = #tpu.pipeline_mode<synchronous>, transform_indices = @transform_2, window_bounds = array<i64: 1, 32>}, {transform_indices = @transform_3, window_bounds = array<i64: 8, 32>}]} {
    %c0 = arith.constant 0 : index
    %c0_0 = arith.constant 0 : index
    %0 = vector.load %arg1[%c0, %c0_0] : memref<8x64xf32, #tpu.memory_space<vmem>>, vector<8x64xf32>
    %c0_1 = arith.constant 0 : index
    %c0_2 = arith.constant 0 : index
    %1 = vector.load %arg2[%c0_1, %c0_2] : memref<64x32xf32, #tpu.memory_space<vmem>>, vector<64x32xf32>
    %cst = arith.constant dense<0.000000e+00> : vector<8x32xf32>
    %2 = tpu.matmul %0, %1, %cst {dimension_numbers = #tpu.dot_dimension_numbers<[1], [0], [0], [1], [0, 0, 1, 1], [], []>} : vector<8x64xf32>, vector<64x32xf32>, vector<8x32xf32> -> vector<8x32xf32>
    %c0_3 = arith.constant 0 : index
    %c0_4 = arith.constant 0 : index
    %3 = vector.load %arg3[%c0_3, %c0_4] : memref<1x32xf32, #tpu.memory_space<vmem>>, vector<1x32xf32>
    %4 = vector.broadcast %3 : vector<1x32xf32> to vector<8x32xf32>
    %5 = arith.addf %2, %4 : vector<8x32xf32>
    %cst_5 = arith.constant 0.000000e+00 : f32
    %6 = vector.broadcast %cst_5 : f32 to vector<8x32xf32>
    %7 = arith.maximumf %5, %6 : vector<8x32xf32>
    %c0_6 = arith.constant 0 : index
    %c0_7 = arith.constant 0 : index
    %8 = vector.load %arg4[%c0_6, %c0_7] : memref<8x32xf32, #tpu.memory_space<vmem>>, vector<8x32xf32>
    tpu.vector_store %arg4[%c0_6, %c0_7], %7 {strides = array<i32>} : memref<8x32xf32, #tpu.memory_space<vmem>>, vector<8x32xf32>,
    return
  }
  func.func @transform_0(%arg0: i32) -> (i32, i32) {
    %c0_i32 = arith.constant 0 : i32
    %c0_i32_0 = arith.constant 0 : i32
    return %arg0, %c0_i32 : i32, i32
  }
  func.func @transform_1(%arg0: i32) -> (i32, i32) {
    %c0_i32 = arith.constant 0 : i32
    %c0_i32_0 = arith.constant 0 : i32
    %c0_i32_1 = arith.constant 0 : i32
    return %c0_i32, %c0_i32_0 : i32, i32
  }
  func.func @transform_2(%arg0: i32) -> (i32, i32) {
    %c0_i32 = arith.constant 0 : i32
    %c0_i32_0 = arith.constant 0 : i32
    %c0_i32_1 = arith.constant 0 : i32
    return %c0_i32, %c0_i32_0 : i32, i32
  }
  func.func @transform_3(%arg0: i32) -> (i32, i32) {
    %c0_i32 = arith.constant 0 : i32
    %c0_i32_0 = arith.constant 0 : i32
    return %arg0, %c0_i32 : i32, i32
  }
}

</mosaic_0001>

<llo_original>
// kernel: tpu_custom_call.1
$region0: #{tpu_custom_call.1}
  #allocation0 [shape = 'u32[]', space=smem, size = 0x4, offset = 0x4, fixed_abs, tag = 'smem constant byte address 0x4 - core index']
  #allocation1 [shape = 'u32[144,128]{1,0:T(1,128)}', space=vmem, size = 0x12000, scoped, tag = 'internal scratch']
  %s0 = inlined_call_operand.vmem [shape: f32[8,64], index: 0, kind: input, shape index: {}]
  %s1 = inlined_call_operand.vmem [shape: f32[64,32], index: 1, kind: input, shape index: {}]
  %s2 = inlined_call_operand.vmem [shape: f32[1,32], index: 2, kind: input, shape index: {}]
  %s3 = inlined_call_operand.hbm [shape: f32[8,32], index: 3, kind: output, shape index: {}]
  %s4 = sld [smem:[#allocation0]]
  $region22: #{tpu_custom_call.1} parent=0
    _
  %s6 = ssub.s32 1, %s4
  %s7 = scalar_select 0, %s6, %s4
  $region1: #{tpu_custom_call.1} parent=0
    #allocation2 [shape = 'u8[4096]{0}', space=vmem, size = 0x1000, scoped, tag = 'output window, operand 0, single buffered']
    #allocation3 [shape = 's32[1]{0}', space=sflag, size = 0x4, scoped, tag = 'scoped memory for tpu_custom_call.1']
    %8 = vsyncpa [#allocation3], 0
    // Predicated region
    $region2: #{tpu_custom_call.1} parent=1 // pred_check
      _
    $region3: #{tpu_custom_call.1} parent=1 // pred_check_branch
      %10 = sbr.rel (0) target = $region5
    $region4: #{tpu_custom_call.1} parent=1 // pred_region
      _
    $region5: #{tpu_custom_call.1} parent=1 // pred_fallthru
      _
    // Predicated region
    $region6: #{tpu_custom_call.1} parent=1 // pred_check
      _
    $region7: #{tpu_custom_call.1} parent=1 // pred_check_branch
      %12 = sbr.rel (0) target = $region9
    $region8: #{tpu_custom_call.1} parent=1 // pred_region
      _
    $region9: #{tpu_custom_call.1} parent=1 // pred_fallthru
      _
    // Predicated region
    $region10: #{tpu_custom_call.1} parent=1 // pred_check
      _
    $region11: #{tpu_custom_call.1} parent=1 // pred_check_branch
      %14 = sbr.rel (0) target = $region13
    $region12: #{tpu_custom_call.1} parent=1 // pred_region
      _
    $region13: #{tpu_custom_call.1} parent=1 // pred_fallthru
      _
    %v15 = vld [vmem:[%s0] sm:$0xff]
    %v16 = vld [vmem:[%s1] sm:$0xff]
    %v17 = vld [vmem:[%s1 + $0x8] sm:$0xff]
    %v18 = vld [vmem:[%s1 + $0x10] sm:$0xff]
    %v19 = vld [vmem:[%s1 + $0x18] sm:$0xff]
    %v20 = vld [vmem:[%s1 + $0x20] sm:$0xff]
    %v21 = vld [vmem:[%s1 + $0x28] sm:$0xff]
    %v22 = vld [vmem:[%s1 + $0x30] sm:$0xff]
    %v23 = vld [vmem:[%s1 + $0x38] sm:$0xff]
    %v24 = vld [vmem:[%s2] sm:$0x1]
    %v26 = vlaneseq
    %v27 = vshrl.u32 %v26, 7
    %v28 = vsub.s32 0, %v27
    %v29 = vrot.slane %v24, %v28
    %vm31 = vcmask 523264
    %v33 = vsel %vm31, %v15, 0
    %35 = vmatprep.subr.mxu0 0.0
    %36 = vmatpush1.msra.mxu0 %v16
    %37 = vmatprep.subr.mxu0 0.0
    %38 = vmatpush1.msra.mxu0 %v17
    %39 = vmatprep.subr.mxu0 0.0
    %40 = vmatpush1.msra.mxu0 %v18
    %41 = vmatprep.subr.mxu0 0.0
    %42 = vmatpush1.msra.mxu0 %v19
    %43 = vmatprep.subr.mxu0 0.0
    %44 = vmatpush1.msra.mxu0 %v20
    %45 = vmatprep.subr.mxu0 0.0
    %46 = vmatpush1.msra.mxu0 %v21
    %47 = vmatprep.subr.mxu0 0.0
    %48 = vmatpush1.msra.mxu0 %v22
    %49 = vmatprep.subr.mxu0 0.0
    %50 = vmatpush1.msra.mxu0 %v23
    %51 = vmatprep.subr.mxu0 0.0
    %52 = vmatpush1.msra.mxu0 0.0
    %53 = vmatprep.subr.mxu0 0.0
    %54 = vmatpush1.msra.mxu0 0.0
    %55 = vmatprep.subr.mxu0 0.0
    %56 = vmatpush1.msra.mxu0 0.0
    %57 = vmatprep.subr.mxu0 0.0
    %58 = vmatpush1.msra.mxu0 0.0
    %59 = vmatprep.subr.mxu0 0.0
    %60 = vmatpush1.msra.mxu0 0.0
    %61 = vmatprep.subr.mxu0 0.0
    %62 = vmatpush1.msra.mxu0 0.0
    %63 = vmatprep.subr.mxu0 0.0
    %64 = vmatpush1.msra.mxu0 0.0
    %65 = vmatprep.subr.mxu0 0.0
    %66 = vmatpush1.msra.mxu0 0.0
    %67 = vmatprep.subr.mxu0 0.0
    %68 = vmatpush1.msra.mxu0 0.0
    %69 = vmatprep.subr.mxu0 0.0
    %70 = vmatpush1.msra.mxu0 0.0
    %71 = vmatprep.subr.mxu0 0.0
    %72 = vmatpush1.msra.mxu0 0.0
    %73 = vmatprep.subr.mxu0 0.0
    %74 = vmatpush1.msra.mxu0 0.0
    %75 = vmatprep.subr.mxu0 0.0
    %76 = vmatpush1.msra.mxu0 0.0
    %77 = vmatprep.subr.mxu0 0.0
    %78 = vmatpush1.msra.mxu0 0.0
    %79 = vmatprep.subr.mxu0 0.0
    %80 = vmatpush1.msra.mxu0 0.0
    %81 = vmatprep.subr.mxu0 0.0
    %82 = vmatpush1.msra.mxu0 0.0
    %83 = vmatprep.subr.mxu0 0.0
    %84 = vmatpush1.msra.mxu0 0.0
    %85 = vmatprep.subr.mxu0 0.0
    %86 = vmatpush1.msra.mxu0 0.0
    %87 = vmatprep.subr.mxu0 0.0
    %88 = vmatpush1.msra.mxu0 0.0
    %89 = vmatprep.subr.mxu0 0.0
    %90 = vmatpush1.msra.mxu0 0.0
    %91 = vmatprep.subr.mxu0 0.0
    %92 = vmatpush1.msra.mxu0 0.0
    %93 = vmatprep.subr.mxu0 0.0
    %94 = vmatpush1.msra.mxu0 0.0
    %95 = vmatprep.subr.mxu0 0.0
    %96 = vmatpush1.msra.mxu0 0.0
    %97 = vmatprep.subr.mxu0 0.0
    %98 = vmatpush1.msra.mxu0 0.0
    %99 = vmatprep.mubr.f32.mxu0 0.0
    %100 = vmatmul.mubr.f32.gmra.mrb[0].mxu0 %v33
    %v101 = vpop.f32.mrb[0].mxu0
    %v102 = vadd.f32 %v29, %v101
    %v103 = vpop.f32.mrb[0].mxu0
    %104 = vdwg.mxu0
    %v105 = vmax.f32 %v102, 0.0
    %vm106 = vcmask 261120
    %107 = vst.msk [vmem:[#allocation2] sm:$0xff] %vm106, %v105
    // Predicated region
    $region14: #{tpu_custom_call.1} parent=1 // pred_check
      _
    $region15: #{tpu_custom_call.1} parent=1 // pred_check_branch
      %109 = sbr.rel (0) target = $region17
    $region16: #{tpu_custom_call.1} parent=1 // pred_region
      %s111 = ssub.s32 128, 128
      %112 = vsyncadd [#allocation3], %s111
      %s114 = sshll.u32 [#allocation2], 4
      %s115 = int_to_ptr.vmem [resolvable:$true] %s114
      %117 = dma.vmem_to_hbm [thread:$0]  %s115, 128, %s3, [#allocation3]
    $region17: #{tpu_custom_call.1} parent=1 // pred_fallthru
      _
    // Predicated region
    $region18: #{tpu_custom_call.1} parent=1 // pred_check
      _
    $region19: #{tpu_custom_call.1} parent=1 // pred_check_branch
      %119 = sbr.rel (0) target = $region21
    $region20: #{tpu_custom_call.1} parent=1 // pred_region
      %120 = dma.done [#allocation3], 128
    $region21: #{tpu_custom_call.1} parent=1 // pred_fallthru
      _
    %121 = vsyncpa [#allocation3], 1

</llo_original>
